<compile_context>
chip_gen: v6e
topology: v6e:2x2x1
jax: 0.10.0
libtpu: 0.0.40
codegen_flags: <defaults>
</compile_context>

<pallas_src>
import functools

import jax
import jax.numpy as jnp
from jax import lax
from jax.experimental import pallas as pl
from jax.experimental.pallas import tpu as pltpu

MARGIN = 0.01
BN_EPS = 1e-5
L2_EPS = 1e-12


def _cdiv(a, b):
    return -(-a // b)


def _round_up(v, m):
    return _cdiv(v, m) * m


def _vmem_limit(nbytes_needed):
    # At least the 32 MiB scoped default (raises v5e's 16 MiB default),
    # never above v7x's 64 MiB physical VMEM.
    return int(min(max(2 * nbytes_needed, 32 << 20), 64 << 20))


# ---------------------------------------------------------------------------
# Stage 1a: per-row squared L2 norm, accumulated across D tiles.
# ---------------------------------------------------------------------------
def _rownorm_kernel(x_ref, sq_ref, *, d_total, td):
    d = pl.program_id(0)

    @pl.when(d == 0)
    def _():
        sq_ref[...] = jnp.zeros_like(sq_ref)

    x = x_ref[...]
    if d_total % td != 0:
        # Ragged last D tile: mask the out-of-bounds lanes out of the reduction.
        col = d * td + lax.broadcasted_iota(jnp.int32, x.shape, 1)
        x = jnp.where(col < d_total, x, 0.0)
    sq_ref[...] += jnp.sum(x * x, axis=1, keepdims=True)


# ---------------------------------------------------------------------------
# Stage 1b: L2 normalize + BatchNorm1d (training batch stats) per D tile.
# ---------------------------------------------------------------------------
def _bn_kernel(sq_ref, x_ref, gamma_ref, beta_ref, trip_ref, test_ref):
    # F.normalize(x, dim=1)  ==  x * rsqrt(max(||x||^2, eps^2))
    inv_norm = lax.rsqrt(jnp.maximum(sq_ref[...], L2_EPS * L2_EPS))     # (B, 1)
    trip = x_ref[...] * inv_norm
    trip_ref[...] = trip                                                # f32 (returned)

    # BatchNorm1d, training mode: batch mean + biased variance, eps=1e-5.
    mean = jnp.mean(trip, axis=0, keepdims=True)
    diff = trip - mean
    var = jnp.mean(diff * diff, axis=0, keepdims=True)
    test = diff * lax.rsqrt(var + BN_EPS) * gamma_ref[...] + beta_ref[...]
    test_ref[...] = test.astype(test_ref.dtype)                         # bf16 for stage 2
    # TODO(synk): BatchNorm running_mean/running_var side-effect updates are not produced
    # here; track them outside the kernel if eval-time statistics are needed.


# ---------------------------------------------------------------------------
# Stage 2: margin classifier over one lane-dense class tile.
#   cl = where(col == target, test @ Wt - m, test @ Wt)
# ---------------------------------------------------------------------------
def _classifier_kernel(test_ref, w_ref, label_ref, cl_ref):
    # (B, D) bf16 @ (D, TN) bf16 -> (B, TN) f32 on the MXU; plain (1,0) contraction,
    # no per-tile transpose of the weight.
    cosine = jnp.dot(test_ref[...], w_ref[...], preferred_element_type=jnp.float32)
    b, tn = cosine.shape
    col_ids = pl.program_id(0) * tn + lax.broadcasted_iota(jnp.int32, (b, tn), 1)
    cl_ref[...] = jnp.where(col_ids == label_ref[...], cosine - MARGIN, cosine)


def prepare_lbn_neck_params(bn_gamma, bn_beta, fc_weight):
    """One-time parameter prep (do this once per weight update, NOT per forward call).

    The classifier weight is persisted transposed to (D, C) and cast to bf16 so the
    streaming-bound stage-2 kernel moves half the HBM bytes and feeds the MXU its
    native bf16 operands directly.
    """
    w = jnp.asarray(fc_weight, jnp.float32)              # (C, D)
    d = w.shape[1]
    gamma = jnp.asarray(bn_gamma, jnp.float32).reshape(1, d)
    beta = jnp.asarray(bn_beta, jnp.float32).reshape(1, d)
    w_t = w.T.astype(jnp.bfloat16)                       # (D, C), persisted across steps
    return gamma, beta, w_t


def lbn_neck_forward(x, target, gamma, beta, w_t, *, class_tile=1024, d_tile=2048):
    """x: (B, C, H, W) or (B, D); gamma/beta: (1, D) f32; w_t: (D, num_classes) bf16."""
    B = x.shape[0]
    xf = x.reshape(B, -1).astype(jnp.float32)            # (B, D), matches x.view(B, -1)
    D = xf.shape[1]
    assert w_t.shape[0] == D, "w_t must be the (D, num_classes) prepared weight"
    C = w_t.shape[1]
    label = jnp.asarray(target, jnp.int32).reshape(B, 1)

    # ---- Stage 1: L2 normalize + BatchNorm, tiled over lane-dense D tiles ----
    td = D if D <= d_tile else d_tile                    # d_tile is a multiple of 128
    n_d = _cdiv(D, td)

    sq = pl.pallas_call(
        functools.partial(_rownorm_kernel, d_total=D, td=td),
        out_shape=jax.ShapeDtypeStruct((B, 1), jnp.float32),
        grid_spec=pl.GridSpec(
            grid=(n_d,),
            in_specs=[pl.BlockSpec((B, td), lambda d: (0, d))],
            out_specs=pl.BlockSpec((B, 1), lambda d: (0, 0)),      # accumulator (resident)
        ),
        compiler_params=pltpu.CompilerParams(
            dimension_semantics=("arbitrary",),
            vmem_limit_bytes=_vmem_limit(2 * B * td * 4 + 2 * B * 4)),
    )(xf)

    stage1b_need = (2 * B * td * 4        # x tiles (double-buffered)
                    + 2 * B * td * 4      # triplet_feat out (f32)
                    + 2 * B * td * 2      # test_feat out (bf16)
                    + 4 * td * 4          # gamma + beta tiles
                    + 2 * B * 4)          # row norms
    triplet_feat, test_feat = pl.pallas_call(
        _bn_kernel,
        out_shape=(jax.ShapeDtypeStruct((B, D), jnp.float32),      # triplet_feat (returned)
                   jax.ShapeDtypeStruct((B, D), jnp.bfloat16)),    # test_feat (stage-2 LHS)
        grid_spec=pl.GridSpec(
            grid=(n_d,),
            in_specs=[
                pl.BlockSpec((B, 1), lambda d: (0, 0)),            # row norms (resident)
                pl.BlockSpec((B, td), lambda d: (0, d)),           # x tile
                pl.BlockSpec((1, td), lambda d: (0, d)),           # gamma tile
                pl.BlockSpec((1, td), lambda d: (0, d)),           # beta tile
            ],
            out_specs=(
                pl.BlockSpec((B, td), lambda d: (0, d)),
                pl.BlockSpec((B, td), lambda d: (0, d)),
            ),
        ),
        compiler_params=pltpu.CompilerParams(
            dimension_semantics=("parallel",),
            vmem_limit_bytes=_vmem_limit(stage1b_need)),
    )(sq, xf, gamma, beta)

    # ---- Stage 2: tiled margin classifier over the class dimension ----
    tn = min(class_tile, _round_up(C, 128))
    if C > 128:
        # Keep >= 2 class tiles where possible so both v7x TensorCores get work
        # on the "parallel" axis.
        tn = min(tn, max(128, _round_up(_cdiv(C, 2), 128)))
    n_tiles = _cdiv(C, tn)

    def _classifier_call(weight_buffers):
        spec_kw = {}
        bufs = 2
        if weight_buffers is not None:
            spec_kw["pipeline_mode"] = pl.Buffered(weight_buffers)
            bufs = weight_buffers
        need = (bufs * D * tn * 2          # bf16 weight tiles in flight
                + 2 * B * D * 2            # resident bf16 LHS
                + 2 * B * tn * 4           # f32 output tiles
                + 2 * B * 4)               # labels
        return pl.pallas_call(
            _classifier_kernel,
            out_shape=jax.ShapeDtypeStruct((B, C), jnp.float32),
            grid_spec=pl.GridSpec(
                grid=(n_tiles,),
                in_specs=[
                    pl.BlockSpec((B, D), lambda j: (0, 0)),              # bf16 LHS, resident
                    pl.BlockSpec((D, tn), lambda j: (0, j), **spec_kw),  # bf16 weight stream
                    pl.BlockSpec((B, 1), lambda j: (0, 0)),              # labels
                ],
                # Ragged last class tile handled by Pallas masked partial writes:
                # no per-call jnp.pad of W and no output slice.
                out_specs=pl.BlockSpec((B, tn), lambda j: (0, j)),
            ),
            compiler_params=pltpu.CompilerParams(
                dimension_semantics=("parallel",),        # shard class tiles across TCs
                vmem_limit_bytes=_vmem_limit(need)),
        )(test_feat, w_t, label)

    try:
        # 3-deep weight pipeline keeps the HBM stream saturated at tiny batch.
        cl_feat = _classifier_call(3)
    except Exception:
        # Fall back to default double-buffering if Buffered(3) is unsupported.
        cl_feat = _classifier_call(None)

    return cl_feat, triplet_feat


def _reference(x, bn_gamma, bn_beta, fc_weight, target):
    """Pure-JAX f32 reference mirroring the PyTorch forward (training mode)."""
    B = x.shape[0]
    xf = x.reshape(B, -1).astype(jnp.float32)
    norm = jnp.sqrt(jnp.sum(xf * xf, axis=1, keepdims=True))
    triplet = xf / jnp.maximum(norm, L2_EPS)
    mean = jnp.mean(triplet, axis=0, keepdims=True)
    var = jnp.mean((triplet - mean) ** 2, axis=0, keepdims=True)
    test_feat = (triplet - mean) / jnp.sqrt(var + BN_EPS) * bn_gamma[None, :] + bn_beta[None, :]
    cosine = test_feat @ fc_weight.T
    one_hot = jax.nn.one_hot(target, fc_weight.shape[0], dtype=jnp.float32)
    cl = one_hot * (cosine - MARGIN) + (1.0 - one_hot) * cosine
    return cl, triplet


if __name__ == "__main__":
    # Small shapes consistent with the module: in_planes = C*H*W = 128.
    # num_classes=300 exercises the multi-tile + ragged-last-tile classifier path
    # (tn=256 -> 2 "parallel" class tiles, second tile masked past column 300).
    B, C_in, H, W = 8, 32, 2, 2
    in_planes = C_in * H * W
    num_classes = 300

    key = jax.random.PRNGKey(0)
    kx, kw, kt = jax.random.split(key, 3)

    x = jax.random.normal(kx, (B, C_in, H, W), dtype=jnp.float32)
    target = jax.random.randint(kt, (B,), 0, num_classes, dtype=jnp.int32)

    # Deterministic parameter init mirroring the module's __init__:
    #   BN: weight=1, bias=0;  fc: weight ~ Normal(0, 0.001), no bias.
    bn_gamma = jnp.ones((in_planes,), dtype=jnp.float32)
    bn_beta = jnp.zeros((in_planes,), dtype=jnp.float32)
    fc_weight = 0.001 * jax.random.normal(kw, (num_classes, in_planes), dtype=jnp.float32)

    # One-time prep (once per weight update in a training loop, not per forward):
    # bf16 transposed classifier weight + reshaped BN params.
    gamma, beta, w_t = prepare_lbn_neck_params(bn_gamma, bn_beta, fc_weight)
    w_t = jax.block_until_ready(w_t)

    cl_feat, triplet_feat = lbn_neck_forward(x, target, gamma, beta, w_t)
    jax.block_until_ready((cl_feat, triplet_feat))

    cl_ref, trip_ref = _reference(x, bn_gamma, bn_beta, fc_weight, target)
    assert cl_feat.shape == cl_ref.shape and cl_feat.dtype == jnp.float32
    assert triplet_feat.shape == trip_ref.shape
    # triplet_feat stays f32 -> tight check; logits go through bf16 weights/LHS -> looser.
    assert jnp.allclose(triplet_feat, trip_ref, atol=1e-5, rtol=1e-5)
    assert jnp.allclose(cl_feat, cl_ref, atol=2e-3, rtol=2e-2), float(
        jnp.max(jnp.abs(cl_feat - cl_ref)))

    print("KERNEL_OK")
</pallas_src>

<mosaic_0001>
module attributes {stable_mosaic.version = 11 : i64} {
  func.func @_rownorm_kernel(%arg0: i32, %arg1: memref<8x128xf32, #tpu.memory_space<vmem>>, %arg2: memref<8x1xf32, #tpu.memory_space<vmem>>) attributes {dimension_semantics = [#tpu.dimension_semantics<arbitrary>], iteration_bounds = array<i64: 1>, scalar_prefetch = 0 : i64, scratch_operands = 0 : i64, tpu.core_type = #tpu.core_type<tc>, window_params = [{transform_indices = @transform_0, window_bounds = array<i64: 8, 128>}, {pipeline_mode = #tpu.pipeline_mode<synchronous>, transform_indices = @transform_1, window_bounds = array<i64: 8, 1>}]} {
    %c0_i32 = arith.constant 0 : i32
    %0 = arith.cmpi eq, %arg0, %c0_i32 : i32
    %1 = arith.extui %0 : i1 to i32
    %c0_i32_0 = arith.constant 0 : i32
    %2 = arith.cmpi ne, %1, %c0_i32_0 : i32
    scf.if %2 {
      %cst_6 = arith.constant 0.000000e+00 : f32
      %10 = vector.broadcast %cst_6 : f32 to vector<8x1xf32>
      %c0_7 = arith.constant 0 : index
      %c0_8 = arith.constant 0 : index
      %11 = vector.load %arg2[%c0_7, %c0_8] : memref<8x1xf32, #tpu.memory_space<vmem>>, vector<8x1xf32>
      tpu.vector_store %arg2[%c0_7, %c0_8], %10 {strides = array<i32>} : memref<8x1xf32, #tpu.memory_space<vmem>>, vector<8x1xf32>,
    } else {
    }
    %c0 = arith.constant 0 : index
    %c0_1 = arith.constant 0 : index
    %3 = vector.load %arg1[%c0, %c0_1] : memref<8x128xf32, #tpu.memory_space<vmem>>, vector<8x128xf32>
    %c0_2 = arith.constant 0 : index
    %c0_3 = arith.constant 0 : index
    %4 = vector.load %arg2[%c0_2, %c0_3] : memref<8x1xf32, #tpu.memory_space<vmem>>, vector<8x1xf32>
    %5 = arith.mulf %3, %3 : vector<8x128xf32>
    %cst = arith.constant dense<0.000000e+00> : vector<8xf32>
    %6 = vector.multi_reduction <add>, %5, %cst [1] : vector<8x128xf32> to vector<8xf32>
    %7 = vector.shape_cast %6 : vector<8xf32> to vector<8x1xf32>
    %8 = arith.addf %4, %7 : vector<8x1xf32>
    %c0_4 = arith.constant 0 : index
    %c0_5 = arith.constant 0 : index
    %9 = vector.load %arg2[%c0_4, %c0_5] : memref<8x1xf32, #tpu.memory_space<vmem>>, vector<8x1xf32>
    tpu.vector_store %arg2[%c0_4, %c0_5], %8 {strides = array<i32>} : memref<8x1xf32, #tpu.memory_space<vmem>>, vector<8x1xf32>,
    return
  }
  func.func @transform_0(%arg0: i32) -> (i32, i32) {
    %c0_i32 = arith.constant 0 : i32
    %c0_i32_0 = arith.constant 0 : i32
    return %c0_i32, %arg0 : i32, i32
  }
  func.func @transform_1(%arg0: i32) -> (i32, i32) {
    %c0_i32 = arith.constant 0 : i32
    %c0_i32_0 = arith.constant 0 : i32
    %c0_i32_1 = arith.constant 0 : i32
    return %c0_i32, %c0_i32_0 : i32, i32
  }
}

</mosaic_0001>

<llo_original>
// kernel: tpu_custom_call.1
$region0: #{tpu_custom_call.1}
  #allocation0 [shape = 'u32[]', space=smem, size = 0x4, offset = 0x4, fixed_abs, tag = 'smem constant byte address 0x4 - core index']
  #allocation1 [shape = 'u32[144,128]{1,0:T(1,128)}', space=vmem, size = 0x12000, scoped, tag = 'internal scratch']
  %s0 = inlined_call_operand.hbm [shape: f32[8,128], index: 0, kind: input, shape index: {}]
  %s1 = inlined_call_operand.vmem [shape: f32[8,1], index: 1, kind: output, shape index: {}]
  %s2 = sld [smem:[#allocation0]]
  $region22: #{tpu_custom_call.1} parent=0
    _
  %s4 = ssub.s32 1, %s2
  %s5 = scalar_select 0, %s4, %s2
  $region1: #{tpu_custom_call.1} parent=0
    #allocation2 [shape = 'u8[4096]{0}', space=vmem, size = 0x1000, scoped, tag = 'input window, operand 0, single buffered']
    #allocation3 [shape = 's32[1]{0}', space=sflag, size = 0x4, scoped, tag = 'scoped memory for tpu_custom_call.1']
    %6 = vsyncpa [#allocation3], 0
    // Predicated region
    $region2: #{tpu_custom_call.1} parent=1 // pred_check
      _
    $region3: #{tpu_custom_call.1} parent=1 // pred_check_branch
      %8 = sbr.rel (0) target = $region5
    $region4: #{tpu_custom_call.1} parent=1 // pred_region
      %s10 = ssub.s32 128, 128
      %11 = vsyncadd [#allocation3], %s10
      %s13 = sshll.u32 [#allocation2], 4
      %s14 = int_to_ptr.vmem [resolvable:$true] %s13
      %16 = dma.hbm_to_vmem [thread:$0]  %s0, 128, %s14, [#allocation3]
    $region5: #{tpu_custom_call.1} parent=1 // pred_fallthru
      _
    // Predicated region
    $region6: #{tpu_custom_call.1} parent=1 // pred_check
      _
    $region7: #{tpu_custom_call.1} parent=1 // pred_check_branch
      %18 = sbr.rel (0) target = $region9
    $region8: #{tpu_custom_call.1} parent=1 // pred_region
      %19 = dma.done [#allocation3], 128
    $region9: #{tpu_custom_call.1} parent=1 // pred_fallthru
      _
    %p20 = scmp.eq.s32.totalorder 0, 0
    // Predicated region
    $region10: #{tpu_custom_call.1} parent=1 // pred_check
      %p21 = pneg %p20
    $region11: #{tpu_custom_call.1} parent=1 // pred_check_branch
      %23 = sbr.rel (%p21) target = $region13
    $region12: #{tpu_custom_call.1} parent=1 // pred_region
      %vm24 = vcmask 7168
      %25 = vst.msk [vmem:[%s1] sm:$0xff] %vm24, 0.0
    $region13: #{tpu_custom_call.1} parent=1 // pred_fallthru
      _
    %v26 = vld [vmem:[#allocation2] sm:$0xff]
    %v27 = vld [vmem:[%s1] sm:$0xff]
    %v28 = vmul.f32 %v26, %v26
    %29 = vadd.xlane.f32.xlu0 %v28
    %v30 = vpop.xlane.xlu0 %29
    %v31 = vadd.f32 %v27, %v30
    %vm32 = vcmask 7168
    %33 = vst.msk [vmem:[%s1] sm:$0xff] %vm32, %v31
    // Predicated region
    $region14: #{tpu_custom_call.1} parent=1 // pred_check
      _
    $region15: #{tpu_custom_call.1} parent=1 // pred_check_branch
      %35 = sbr.rel (0) target = $region17
    $region16: #{tpu_custom_call.1} parent=1 // pred_region
      _
    $region17: #{tpu_custom_call.1} parent=1 // pred_fallthru
      _
    // Predicated region
    $region18: #{tpu_custom_call.1} parent=1 // pred_check
      _
    $region19: #{tpu_custom_call.1} parent=1 // pred_check_branch
      %37 = sbr.rel (0) target = $region21
    $region20: #{tpu_custom_call.1} parent=1 // pred_region
      _
    $region21: #{tpu_custom_call.1} parent=1 // pred_fallthru
      _
    %38 = vsyncpa [#allocation3], 1

</llo_original>
